<compile_context>
chip_gen: v7x
topology: tpu7x:2x2x1
jax: 0.10.0
libtpu: 0.0.40
codegen_flags: <defaults>
</compile_context>

<pallas_src>
import functools
import math

import jax
import jax.numpy as jnp
from jax import lax
from jax.experimental import pallas as pl
from jax.experimental.pallas import tpu as pltpu

_LANES = 128


def _cdiv(a, b):
    return -(-a // b)


def _round_up(x, m):
    return _cdiv(x, m) * m


def _bce_dice_partial_kernel(p_ref, t_ref, out_ref, *, tile_m, tiles_per_core,
                             n_valid, mask_needed, eps):
    c = pl.program_id(0)   # core-split axis ('parallel')
    i = pl.program_id(1)   # reduction axis over row tiles ('arbitrary')

    # Output block is resident across the reduction axis -> init once per core.
    @pl.when(i == 0)
    def _():
        out_ref[...] = jnp.zeros_like(out_ref)

    p = p_ref[...].astype(jnp.float32)
    t = t_ref[...].astype(jnp.float32)

    # torch.clamp(y_pred, eps, 1 - eps); BCE is computed on the clamped value.
    p = jnp.clip(p, eps, 1.0 - eps)

    tp = t * p                                       # dice intersection term
    tps = t + p                                      # sum(t) + sum(p), fused
    bce = -(t * jnp.log(p) + (1.0 - t) * jnp.log(1.0 - p))

    if mask_needed:
        # Zero out the zero-padded tail so the partial sums are exact.
        row0 = (c * tiles_per_core + i) * tile_m
        rows = lax.broadcasted_iota(jnp.int32, (tile_m, _LANES), 0) + row0
        cols = lax.broadcasted_iota(jnp.int32, (tile_m, _LANES), 1)
        valid = rows * _LANES + cols < n_valid
        zero = jnp.zeros_like(p)
        tp = jnp.where(valid, tp, zero)
        tps = jnp.where(valid, tps, zero)
        bce = jnp.where(valid, bce, zero)

    # Fold (tile_m, 128) -> (8, 128) with vreg-wise VPU adds; the final
    # cross-lane reduction happens once, on a tiny tensor, in the wrapper.
    folds = tile_m // 8
    out_ref[0] += tp.reshape(folds, 8, _LANES).sum(axis=0)
    out_ref[1] += tps.reshape(folds, 8, _LANES).sum(axis=0)
    out_ref[2] += bce.reshape(folds, 8, _LANES).sum(axis=0)


def bce_dice_loss(y_pred, y_true, *, max_tile_m=2048):
    """BCE + Dice loss matching the PyTorch bce_dice_loss module."""
    assert y_pred.shape == y_true.shape, (y_pred.shape, y_true.shape)
    smooth = 1.0
    eps = 1e-7

    n = math.prod(y_pred.shape)
    itemsize = jnp.dtype(y_pred.dtype).itemsize
    sublane = max(8, 32 // max(itemsize, 1))   # 8 for f32, 16 for bf16, 32 for int8

    rows = _cdiv(n, _LANES)
    # 2-way TensorCore split (useful on v7x; just a sequential loop elsewhere).
    n_split = 2 if rows >= 2 * sublane else 1
    tile_m = min(max_tile_m, _round_up(_cdiv(rows, n_split), sublane))
    tiles_per_core = _cdiv(rows, n_split * tile_m)
    rows_padded = n_split * tile_m * tiles_per_core
    mask_needed = (rows_padded * _LANES) != n

    def prep(x):
        flat = x.reshape(-1)
        pad = rows_padded * _LANES - n
        if pad:
            flat = jnp.pad(flat, (0, pad))
        return flat.reshape(rows_padded, _LANES)

    p2 = prep(y_pred)
    t2 = prep(y_true)

    kernel = functools.partial(
        _bce_dice_partial_kernel,
        tile_m=tile_m, tiles_per_core=tiles_per_core,
        n_valid=n, mask_needed=mask_needed, eps=eps)

    partials = pl.pallas_call(
        kernel,
        out_shape=jax.ShapeDtypeStruct((n_split * 3, 8, _LANES), jnp.float32),
        grid_spec=pltpu.PrefetchScalarGridSpec(
            num_scalar_prefetch=0,
            grid=(n_split, tiles_per_core),
            in_specs=[
                pl.BlockSpec((tile_m, _LANES),
                             lambda c, i: (c * tiles_per_core + i, 0)),
                pl.BlockSpec((tile_m, _LANES),
                             lambda c, i: (c * tiles_per_core + i, 0)),
            ],
            out_specs=pl.BlockSpec((3, 8, _LANES), lambda c, i: (c, 0, 0)),
        ),
        compiler_params=pltpu.CompilerParams(
            dimension_semantics=("parallel", "arbitrary")),
    )(p2, t2)

    sums = jnp.sum(partials.reshape(n_split, 3, 8, _LANES), axis=(0, 2, 3))
    sum_tp, sum_tps, sum_bce = sums[0], sums[1], sums[2]

    dice_loss = 1.0 - (2.0 * sum_tp + smooth) / (sum_tps + smooth)
    binary_loss = sum_bce / jnp.float32(n)
    return binary_loss + dice_loss


def _bce_dice_ref(y_pred, y_true):
    """Pure-JAX reference mirroring the PyTorch module."""
    eps = 1e-7
    smooth = 1.0
    p = jnp.clip(y_pred.reshape(-1).astype(jnp.float32), eps, 1.0 - eps)
    t = y_true.reshape(-1).astype(jnp.float32)
    intersection = jnp.sum(t * p)
    dice = 1.0 - (2.0 * intersection + smooth) / (jnp.sum(t) + jnp.sum(p) + smooth)
    bce = jnp.mean(-(t * jnp.log(p) + (1.0 - t) * jnp.log(1.0 - p)))
    return bce + dice


if __name__ == "__main__":
    key = jax.random.PRNGKey(0)

    # Shapes consistent with a segmentation loss: (batch, channels, H, W).
    # The second shape exercises the padding/mask path (462 elements).
    for shape in [(2, 4, 16, 16), (2, 3, 7, 11)]:
        k1, k2, key = jax.random.split(key, 3)
        y_pred = jax.nn.sigmoid(jax.random.normal(k1, shape, dtype=jnp.float32))
        y_true = (jax.random.uniform(k2, shape) > 0.5).astype(jnp.float32)

        out = jax.block_until_ready(bce_dice_loss(y_pred, y_true))
        ref = jax.block_until_ready(_bce_dice_ref(y_pred, y_true))

        assert jnp.isfinite(out), f"non-finite output for shape {shape}"
        assert jnp.allclose(out, ref, rtol=1e-5, atol=1e-6), (shape, out, ref)

    print("KERNEL_OK")
</pallas_src>

<mosaic_0001>
module attributes {stable_mosaic.version = 11 : i64} {
  func.func @_bce_dice_partial_kernel(%arg0: i32, %arg1: i32, %arg2: memref<8x128xf32, #tpu.memory_space<vmem>>, %arg3: memref<8x128xf32, #tpu.memory_space<vmem>>, %arg4: memref<3x8x128xf32, #tpu.memory_space<vmem>>) attributes {dimension_semantics = [#tpu.dimension_semantics<parallel>, #tpu.dimension_semantics<arbitrary>], iteration_bounds = array<i64: 2, 1>, scalar_prefetch = 0 : i64, scratch_operands = 0 : i64, tpu.core_type = #tpu.core_type<tc>, window_params = [{transform_indices = @transform_0, window_bounds = array<i64: 8, 128>}, {transform_indices = @transform_1, window_bounds = array<i64: 8, 128>}, {transform_indices = @transform_2, window_bounds = array<i64: 3, 8, 128>}]} {
    %c0_i32 = arith.constant 0 : i32
    %0 = arith.cmpi eq, %arg1, %c0_i32 : i32
    %1 = arith.extui %0 : i1 to i32
    %c0_i32_0 = arith.constant 0 : i32
    %2 = arith.cmpi ne, %1, %c0_i32_0 : i32
    scf.if %2 {
      %cst_27 = arith.constant 0.000000e+00 : f32
      %46 = vector.broadcast %cst_27 : f32 to vector<3x8x128xf32>
      %c0_28 = arith.constant 0 : index
      %c0_29 = arith.constant 0 : index
      %c0_30 = arith.constant 0 : index
      %47 = vector.load %arg4[%c0_28, %c0_29, %c0_30] : memref<3x8x128xf32, #tpu.memory_space<vmem>>, vector<3x8x128xf32>
      tpu.vector_store %arg4[%c0_28, %c0_29, %c0_30], %46 {strides = array<i32>} : memref<3x8x128xf32, #tpu.memory_space<vmem>>, vector<3x8x128xf32>,
    } else {
    }
    %c0 = arith.constant 0 : index
    %c0_1 = arith.constant 0 : index
    %3 = vector.load %arg2[%c0, %c0_1] : memref<8x128xf32, #tpu.memory_space<vmem>>, vector<8x128xf32>
    %c0_2 = arith.constant 0 : index
    %c0_3 = arith.constant 0 : index
    %4 = vector.load %arg3[%c0_2, %c0_3] : memref<8x128xf32, #tpu.memory_space<vmem>>, vector<8x128xf32>
    %cst = arith.constant 1.000000e-07 : f32
    %cst_4 = arith.constant 0.99999988 : f32
    %5 = vector.broadcast %cst : f32 to vector<8x128xf32>
    %6 = arith.maximumf %5, %3 : vector<8x128xf32>
    %7 = vector.broadcast %cst_4 : f32 to vector<8x128xf32>
    %8 = arith.minimumf %7, %6 : vector<8x128xf32>
    %9 = arith.mulf %4, %8 : vector<8x128xf32>
    %10 = arith.addf %4, %8 : vector<8x128xf32>
    %11 = math.log %8 : vector<8x128xf32>
    %12 = arith.mulf %4, %11 : vector<8x128xf32>
    %cst_5 = arith.constant 1.000000e+00 : f32
    %13 = vector.broadcast %cst_5 : f32 to vector<8x128xf32>
    %14 = arith.subf %13, %4 : vector<8x128xf32>
    %cst_6 = arith.constant 1.000000e+00 : f32
    %15 = vector.broadcast %cst_6 : f32 to vector<8x128xf32>
    %16 = arith.subf %15, %8 : vector<8x128xf32>
    %17 = math.log %16 : vector<8x128xf32>
    %18 = arith.mulf %14, %17 : vector<8x128xf32>
    %19 = arith.addf %12, %18 : vector<8x128xf32>
    %cst_7 = arith.constant 0.000000e+00 : f32
    %20 = vector.broadcast %cst_7 : f32 to vector<8x128xf32>
    %21 = arith.subf %20, %19 : vector<8x128xf32>
    %c0_8 = arith.constant 0 : index
    %c0_9 = arith.constant 0 : index
    %c0_10 = arith.constant 0 : index
    %22 = vector.load %arg4[%c0_8, %c0_9, %c0_10] : memref<3x8x128xf32, #tpu.memory_space<vmem>>, vector<1x8x128xf32>
    %23 = vector.shape_cast %22 : vector<1x8x128xf32> to vector<8x128xf32>
    %24 = vector.shape_cast %9 : vector<8x128xf32> to vector<1x8x128xf32>
    %cst_11 = arith.constant dense<0.000000e+00> : vector<8x128xf32>
    %25 = vector.multi_reduction <add>, %24, %cst_11 [0] : vector<1x8x128xf32> to vector<8x128xf32>
    %26 = arith.addf %23, %25 : vector<8x128xf32>
    %c0_12 = arith.constant 0 : index
    %c0_13 = arith.constant 0 : index
    %c0_14 = arith.constant 0 : index
    %27 = vector.load %arg4[%c0_12, %c0_13, %c0_14] : memref<3x8x128xf32, #tpu.memory_space<vmem>>, vector<1x8x128xf32>
    %28 = vector.shape_cast %27 : vector<1x8x128xf32> to vector<8x128xf32>
    %29 = vector.shape_cast %26 : vector<8x128xf32> to vector<1x8x128xf32>
    tpu.vector_store %arg4[%c0_12, %c0_13, %c0_14], %29 {strides = array<i32>} : memref<3x8x128xf32, #tpu.memory_space<vmem>>, vector<1x8x128xf32>,
    %c1 = arith.constant 1 : index
    %c0_15 = arith.constant 0 : index
    %c0_16 = arith.constant 0 : index
    %30 = vector.load %arg4[%c1, %c0_15, %c0_16] : memref<3x8x128xf32, #tpu.memory_space<vmem>>, vector<1x8x128xf32>
    %31 = vector.shape_cast %30 : vector<1x8x128xf32> to vector<8x128xf32>
    %32 = vector.shape_cast %10 : vector<8x128xf32> to vector<1x8x128xf32>
    %cst_17 = arith.constant dense<0.000000e+00> : vector<8x128xf32>
    %33 = vector.multi_reduction <add>, %32, %cst_17 [0] : vector<1x8x128xf32> to vector<8x128xf32>
    %34 = arith.addf %31, %33 : vector<8x128xf32>
    %c1_18 = arith.constant 1 : index
    %c0_19 = arith.constant 0 : index
    %c0_20 = arith.constant 0 : index
    %35 = vector.load %arg4[%c1_18, %c0_19, %c0_20] : memref<3x8x128xf32, #tpu.memory_space<vmem>>, vector<1x8x128xf32>
    %36 = vector.shape_cast %35 : vector<1x8x128xf32> to vector<8x128xf32>
    %37 = vector.shape_cast %34 : vector<8x128xf32> to vector<1x8x128xf32>
    tpu.vector_store %arg4[%c1_18, %c0_19, %c0_20], %37 {strides = array<i32>} : memref<3x8x128xf32, #tpu.memory_space<vmem>>, vector<1x8x128xf32>,
    %c2 = arith.constant 2 : index
    %c0_21 = arith.constant 0 : index
    %c0_22 = arith.constant 0 : index
    %38 = vector.load %arg4[%c2, %c0_21, %c0_22] : memref<3x8x128xf32, #tpu.memory_space<vmem>>, vector<1x8x128xf32>
    %39 = vector.shape_cast %38 : vector<1x8x128xf32> to vector<8x128xf32>
    %40 = vector.shape_cast %21 : vector<8x128xf32> to vector<1x8x128xf32>
    %cst_23 = arith.constant dense<0.000000e+00> : vector<8x128xf32>
    %41 = vector.multi_reduction <add>, %40, %cst_23 [0] : vector<1x8x128xf32> to vector<8x128xf32>
    %42 = arith.addf %39, %41 : vector<8x128xf32>
    %c2_24 = arith.constant 2 : index
    %c0_25 = arith.constant 0 : index
    %c0_26 = arith.constant 0 : index
    %43 = vector.load %arg4[%c2_24, %c0_25, %c0_26] : memref<3x8x128xf32, #tpu.memory_space<vmem>>, vector<1x8x128xf32>
    %44 = vector.shape_cast %43 : vector<1x8x128xf32> to vector<8x128xf32>
    %45 = vector.shape_cast %42 : vector<8x128xf32> to vector<1x8x128xf32>
    tpu.vector_store %arg4[%c2_24, %c0_25, %c0_26], %45 {strides = array<i32>} : memref<3x8x128xf32, #tpu.memory_space<vmem>>, vector<1x8x128xf32>,
    return
  }
  func.func @transform_0(%arg0: i32, %arg1: i32) -> (i32, i32) {
    %c1_i32 = arith.constant 1 : i32
    %0 = arith.muli %arg0, %c1_i32 : i32
    %1 = arith.addi %0, %arg1 : i32
    %c0_i32 = arith.constant 0 : i32
    %c0_i32_0 = arith.constant 0 : i32
    return %1, %c0_i32 : i32, i32
  }
  func.func @transform_1(%arg0: i32, %arg1: i32) -> (i32, i32) {
    %c1_i32 = arith.constant 1 : i32
    %0 = arith.muli %arg0, %c1_i32 : i32
    %1 = arith.addi %0, %arg1 : i32
    %c0_i32 = arith.constant 0 : i32
    %c0_i32_0 = arith.constant 0 : i32
    return %1, %c0_i32 : i32, i32
  }
  func.func @transform_2(%arg0: i32, %arg1: i32) -> (i32, i32, i32) {
    %c0_i32 = arith.constant 0 : i32
    %c0_i32_0 = arith.constant 0 : i32
    %c0_i32_1 = arith.constant 0 : i32
    return %arg0, %c0_i32, %c0_i32_0 : i32, i32, i32
  }
}

</mosaic_0001>

<llo_original>
// kernel: tpu_custom_call.1
$region0: #{tpu_custom_call.1}
  #allocation0 [shape = 'u32[]', space=smem, size = 0x4, offset = 0x4, fixed_abs, tag = 'smem constant byte address 0x4 - core index']
  #allocation1 [shape = 'u32[144,128]{1,0:T(1,128)}', space=vmem, size = 0x12000, scoped, tag = 'internal scratch']
  %s0 = inlined_call_operand.hbm [shape: f32[16,128], index: 0, kind: input, shape index: {}]
  %s1 = inlined_call_operand.hbm [shape: f32[16,128], index: 1, kind: input, shape index: {}]
  %s2 = inlined_call_operand.hbm [shape: f32[6,8,128], index: 2, kind: output, shape index: {}]
  %s3 = sld [smem:[#allocation0]]
  $region53: #{tpu_custom_call.1} parent=0
    _
  %s5 = ssub.s32 1, %s3
  %s6 = scalar_select 0, %s5, %s3
  $region1: #{tpu_custom_call.1} parent=0
    #allocation2 [shape = 'u8[8192]{0}', space=vmem, size = 0x2000, scoped, tag = 'input window, operand 0']
    #allocation3 [shape = 's32[2]{0}', space=sflag, size = 0x8, scoped, tag = 'scoped memory for tpu_custom_call.1']
    #allocation4 [shape = 's32[2]{0}', space=sflag, size = 0x8, scoped, tag = 'scoped memory for tpu_custom_call.1']
    #allocation5 [shape = 'u8[8192]{0}', space=vmem, size = 0x2000, scoped, tag = 'input window, operand 1']
    #allocation6 [shape = 's32[2]{0}', space=sflag, size = 0x8, scoped, tag = 'scoped memory for tpu_custom_call.1']
    #allocation7 [shape = 'u8[24576]{0}', space=vmem, size = 0x6000, scoped, tag = 'output window, operand 0']
    %7 = vsyncpa [#allocation3], 0
    %s8 = scalar_lea.sflag [#allocation3], 1
    %9 = vsyncpa %s8, 0
    %10 = vsyncpa [#allocation6], 0
    %s11 = scalar_lea.sflag [#allocation6], 1
    %12 = vsyncpa %s11, 0
    %13 = vsyncpa [#allocation4], 0
    %s14 = scalar_lea.sflag [#allocation4], 1
    %15 = vsyncpa %s14, 0
    loop: start=0, step=1, limit=4
    $region2: #{tpu_custom_call.1} parent=1 // loop_pre_header
      _
    $region3: #{tpu_custom_call.1} parent=1 // loop_header
      %s17 = sphi 0, %s21
      %p18 = scmp.ge.s32.totalorder %s17, 4
      %s24 = sphi 0, %s36
      %s25 = sphi 0, %s32
      %s26 = sphi 0, %s24
      %s27 = sphi 0, %s25
      %s28 = sphi 0, %s26
      %s29 = sphi 0, %s27
      %s41 = sphi 0, %s43
      %s44 = sphi 0, %s41
      %s45 = sphi 0, %s44
      %s61 = sphi 0, %s45
      %s69 = sphi 0, %s71
      %s72 = sphi 0, %s69
      %s73 = sphi 0, %s72
      %s89 = sphi 0, %s73
      %s95 = sphi 0, %s97
      %s98 = sphi 0, %s95
      %s99 = sphi 0, %s98
      %s115 = sphi 0, %s99
    $region4: #{tpu_custom_call.1} parent=1 // loop_header_branch
      %20 = sbr.rel (%p18) target = $region8
    $region5: #{tpu_custom_call.1} parent=1 // loop_body
      %s22 = ssub.s32 %s17, 1
      %s23 = ssub.s32 %s17, 2
      %s30 = sadd.s32 1, %s25
      %p31 = scmp.ge.s32.totalorder %s30, 1
      %s32 = scalar_select %p31, 0, %s30
      %s33 = sadd.s32 1, %s24
      %s34 = scalar_select %p31, %s33, %s24
      %p35 = scmp.ge.s32.totalorder %s34, 2
      %s36 = scalar_select %p35, 0, %s34
      %s37 = sadd.s32 %s24, %s25
      %s38 = sadd.s32 %s36, %s32
      %s39 = ssub.s32 %s37, %s38
      %p40 = scmp.eq.s32.totalorder %s39, 0
      %s42 = sadd.s32 %s41, 1
      %s43 = scalar_select %p40, %s41, %s42
      %p46 = pneg %p40
      %p47 = scmp.eq.s32.totalorder %s17, 1
      %p48 = por %p46, %p47
      %p49 = scmp.ne.s32.totalorder %s41, %s44
      %p50 = scmp.eq.s32.totalorder %s17, 0
      %p51 = por %p49, %p50
      %p52 = scmp.ne.s32.totalorder %s41, %s44
      %p53 = scmp.eq.s32.totalorder %s22, 1
      %p54 = por %p52, %p53
      %p55 = scmp.ne.s32.totalorder %s44, %s45
      %p56 = scmp.eq.s32.totalorder %s22, 0
      %p57 = por %p55, %p56
      %p58 = scmp.ne.s32.totalorder %s44, %s45
      %p59 = scmp.eq.s32.totalorder %s23, 1
      %p60 = por %p58, %p59
      %p62 = scmp.ne.s32.totalorder %s45, %s61
      %p63 = scmp.eq.s32.totalorder %s23, 0
      %p64 = por %p62, %p63
      %s65 = sadd.s32 %s24, %s25
      %s66 = sadd.s32 %s36, %s32
      %s67 = ssub.s32 %s65, %s66
      %p68 = scmp.eq.s32.totalorder %s67, 0
      %s70 = sadd.s32 %s69, 1
      %s71 = scalar_select %p68, %s69, %s70
      %p74 = pneg %p68
      %p75 = scmp.eq.s32.totalorder %s17, 1
      %p76 = por %p74, %p75
      %p77 = scmp.ne.s32.totalorder %s69, %s72
      %p78 = scmp.eq.s32.totalorder %s17, 0
      %p79 = por %p77, %p78
      %p80 = scmp.ne.s32.totalorder %s69, %s72
      %p81 = scmp.eq.s32.totalorder %s22, 1
      %p82 = por %p80, %p81
      %p83 = scmp.ne.s32.totalorder %s72, %s73
      %p84 = scmp.eq.s32.totalorder %s22, 0
      %p85 = por %p83, %p84
      %p86 = scmp.ne.s32.totalorder %s72, %s73
      %p87 = scmp.eq.s32.totalorder %s23, 1
      %p88 = por %p86, %p87
      %p90 = scmp.ne.s32.totalorder %s73, %s89
      %p91 = scmp.eq.s32.totalorder %s23, 0
      %p92 = por %p90, %p91
      %s93 = ssub.s32 %s24, %s36
      %p94 = scmp.eq.s32.totalorder %s93, 0
      %s96 = sadd.s32 %s95, 1
      %s97 = scalar_select %p94, %s95, %s96
      %p100 = pneg %p94
      %p101 = scmp.eq.s32.totalorder %s17, 1
      %p102 = por %p100, %p101
      %p103 = scmp.ne.s32.totalorder %s95, %s98
      %p104 = scmp.eq.s32.totalorder %s17, 0
      %p105 = por %p103, %p104
      %p106 = scmp.ne.s32.totalorder %s95, %s98
      %p107 = scmp.eq.s32.totalorder %s22, 1
      %p108 = por %p106, %p107
      %p109 = scmp.ne.s32.totalorder %s98, %s99
      %p110 = scmp.eq.s32.totalorder %s22, 0
      %p111 = por %p109, %p110
      %p112 = scmp.ne.s32.totalorder %s98, %s99
      %p113 = scmp.eq.s32.totalorder %s23, 1
      %p114 = por %p112, %p113
      %p116 = scmp.ne.s32.totalorder %s99, %s115
      %p117 = scmp.eq.s32.totalorder %s23, 0
      %p118 = por %p116, %p117
      %p119 = scmp.le.s32.totalorder 1, %s17
      %p120 = scmp.lt.s32.totalorder %s17, 3
      %p121 = pnand %p119, %p120
      %p122 = pneg %p121
      // Predicated region
      $region9: #{tpu_custom_call.1} parent=5 // pred_check
        _
      $region10: #{tpu_custom_call.1} parent=5 // pred_check_branch
        %124 = sbr.rel (%p121) target = $region12
      $region11: #{tpu_custom_call.1} parent=5 // pred_region
        %s125 = ssub.s32 %s17, 1
      $region12: #{tpu_custom_call.1} parent=5 // pred_fallthru
        _
      %p126 = scmp.lt.s32.totalorder %s17, 2
      // Predicated region
      $region13: #{tpu_custom_call.1} parent=5 // pred_check
        %p127 = pneg %p126
      $region14: #{tpu_custom_call.1} parent=5 // pred_check_branch
        %129 = sbr.rel (%p127) target = $region16
      $region15: #{tpu_custom_call.1} parent=5 // pred_region
        // Predicated region
        $region17: #{tpu_custom_call.1} parent=15 // pred_check
          %p130 = pneg %p51
        $region18: #{tpu_custom_call.1} parent=15 // pred_check_branch
          %132 = sbr.rel (%p130) target = $region20
        $region19: #{tpu_custom_call.1} parent=15 // pred_region
          %s133 = sand.u32 %s41, 1
          %s134 = scalar_lea.sflag [#allocation3], %s133
          %s135 = sand.u32 %s41, 1
          %s136 = smul.addr %s135, 8
          %s137 = scalar_lea.vmem [#allocation2], %s136
          %s138 = sadd.s32 %s24, %s25
          %s140 = ssub.s32 128, 128
          %141 = vsyncadd %s134, %s140
          %s142 = smul.addr %s138, 128
          %s143 = scalar_lea.hbm %s0, %s142
          %s145 = sshll.u32 %s137, 4
          %s146 = int_to_ptr.vmem [resolvable:$true] %s145
          %148 = dma.hbm_to_vmem [thread:$0]  %s143, 128, %s146, %s134
        $region20: #{tpu_custom_call.1} parent=15 // pred_fallthru
          _
        // Predicated region
        $region21: #{tpu_custom_call.1} parent=15 // pred_check
          %p149 = pneg %p79
        $region22: #{tpu_custom_call.1} parent=15 // pred_check_branch
          %151 = sbr.rel (%p149) target = $region24
        $region23: #{tpu_custom_call.1} parent=15 // pred_region
          %s152 = sand.u32 %s69, 1
          %s153 = scalar_lea.sflag [#allocation6], %s152
          %s154 = sand.u32 %s69, 1
          %s155 = smul.addr %s154, 8
          %s156 = scalar_lea.vmem [#allocation5], %s155
          %s157 = sadd.s32 %s24, %s25
          %s159 = ssub.s32 128, 128
          %160 = vsyncadd %s153, %s159
          %s161 = smul.addr %s157, 128
          %s162 = scalar_lea.hbm %s1, %s161
          %s164 = sshll.u32 %s156, 4
          %s165 = int_to_ptr.vmem [resolvable:$true] %s164
          %167 = dma.hbm_to_vmem [thread:$0]  %s162, 128, %s165, %s153
        $region24: #{tpu_custom_call.1} parent=15 // pred_fallthru
          _
      $region16: #{tpu_custom_call.1} parent=5 // pred_fallthru
        _
      %p168 = scmp.le.s32.totalorder 1, %s17
      %p169 = scmp.lt.s32.totalorder %s17, 3
      %p170 = pnand %p168, %p169
      %p171 = pneg %p170
      // Predicated region
      $region25: #{tpu_custom_call.1} parent=5 // pred_check
        _
      $region26: #{tpu_custom_call.1} parent=5 // pred_check_branch
        %173 = sbr.rel (%p170) target = $region28
      $region27: #{tpu_custom_call.1} parent=5 // pred_region
        %s174 = ssub.s32 %s17, 1
        %s175 = sand.u32 %s44, 1
        %s176 = scalar_lea.sflag [#allocation3], %s175
        %s177 = sand.u32 %s44, 1
        %s178 = smul.addr %s177, 8
        %s179 = scalar_lea.vmem [#allocation2], %s178
        // Predicated region
        $region29: #{tpu_custom_call.1} parent=27 // pred_check
          %p180 = pneg %p57
        $region30: #{tpu_custom_call.1} parent=27 // pred_check_branch
          %182 = sbr.rel (%p180) target = $region32
        $region31: #{tpu_custom_call.1} parent=27 // pred_region
          %183 = dma.done %s176, 128
        $region32: #{tpu_custom_call.1} parent=27 // pred_fallthru
          _
        %s184 = sand.u32 %s72, 1
        %s185 = scalar_lea.sflag [#allocation6], %s184
        %s186 = sand.u32 %s72, 1
        %s187 = smul.addr %s186, 8
        %s188 = scalar_lea.vmem [#allocation5], %s187
        // Predicated region
        $region33: #{tpu_custom_call.1} parent=27 // pred_check
          %p189 = pneg %p85
        $region34: #{tpu_custom_call.1} parent=27 // pred_check_branch
          %191 = sbr.rel (%p189) target = $region36
        $region35: #{tpu_custom_call.1} parent=27 // pred_region
          %192 = dma.done %s185, 128
        $region36: #{tpu_custom_call.1} parent=27 // pred_fallthru
          _
        %s193 = sand.u32 %s44, 1
        %s194 = scalar_lea.sflag [#allocation3], %s193
        %s195 = sand.u32 %s44, 1
        %s196 = smul.addr %s195, 8
        %s197 = scalar_lea.vmem [#allocation2], %s196
        %p198 = pneg %p57
        %p199 = pneg %p54
        %s200 = sand.u32 %s72, 1
        %s201 = scalar_lea.sflag [#allocation6], %s200
        %s202 = sand.u32 %s72, 1
        %s203 = smul.addr %s202, 8
        %s204 = scalar_lea.vmem [#allocation5], %s203
        %p205 = pneg %p85
        %p206 = pneg %p82
        %p207 = pneg %p111
        %p208 = pneg %p108
        %s209 = sand.u32 %s98, 1
        %s210 = scalar_lea.sflag [#allocation4], %s209
        %s211 = sand.u32 %s98, 1
        %s212 = smul.addr %s211, 24
        %s213 = scalar_lea.vmem [#allocation7], %s212
        %s214 = sadd.s32 %s26, %s27
        %s215 = sadd.s32 %s26, %s27
        %s216 = smul.u32 3, %s26
        %p217 = scmp.eq.s32.totalorder %s27, 0
        // Predicated region
        $region37: #{tpu_custom_call.1} parent=27 // pred_check
          %p218 = pneg %p217
        $region38: #{tpu_custom_call.1} parent=27 // pred_check_branch
          %220 = sbr.rel (%p218) target = $region40
        $region39: #{tpu_custom_call.1} parent=27 // pred_region
          %221 = vst [vmem:[%s213] sm:$0xff] 0.0
          %222 = vst [vmem:[%s213 + $0x8] sm:$0xff] 0.0
          %223 = vst [vmem:[%s213 + $0x10] sm:$0xff] 0.0
        $region40: #{tpu_custom_call.1} parent=27 // pred_fallthru
          _
        %v224 = vld [vmem:[%s179] sm:$0xff]
        %v225 = vld [vmem:[%s188] sm:$0xff]
        %v226 = vmax.f32 %v224, 1e-07
        %v227 = vmin.f32 %v226, 0.9999999
        %v228 = vmul.f32 %v225, %v227
        %v229 = vadd.f32 %v225, %v227
        %v230 = vlog2.pop %v227
        %v231 = vmul.f32 %v230, 0.6931472
        %v232 = vmul.f32 %v225, %v231
        %v233 = vsub.f32 1.0, %v225
        %v234 = vsub.f32 1.0, %v227
        %v235 = vlog2.pop %v234
        %v236 = vmul.f32 %v235, 0.6931472
        %v237 = vmul.f32 %v233, %v236
        %v238 = vadd.f32 %v232, %v237
        %v239 = vsub.f32 0.0, %v238
        %v240 = vld [vmem:[%s213] sm:$0xff]
        %v241 = vadd.f32 %v228, 0.0
        %v242 = vadd.f32 %v240, %v241
        %243 = vst [vmem:[%s213] sm:$0xff] %v242
        %s244 = scalar_lea.vmem %s213, 8 [#allocation7]
        %v245 = vld [vmem:[%s244] sm:$0xff]
        %v246 = vadd.f32 %v229, 0.0
        %v247 = vadd.f32 %v245, %v246
        %248 = vst [vmem:[%s244] sm:$0xff] %v247
        %s249 = scalar_lea.vmem %s213, 16 [#allocation7]
        %v250 = vld [vmem:[%s249] sm:$0xff]
        %v251 = vadd.f32 %v239, 0.0
        %v252 = vadd.f32 %v250, %v251
        %253 = vst [vmem:[%s249] sm:$0xff] %v252
        %s254 = sand.u32 %s98, 1
        %s255 = scalar_lea.sflag [#allocation4], %s254
        %s256 = sand.u32 %s98, 1
        %s257 = smul.addr %s256, 24
        %s258 = scalar_lea.vmem [#allocation7], %s257
        // Predicated region
        $region41: #{tpu_custom_call.1} parent=27 // pred_check
          %p259 = pneg %p108
        $region42: #{tpu_custom_call.1} parent=27 // pred_check_branch
          %261 = sbr.rel (%p259) target = $region44
        $region43: #{tpu_custom_call.1} parent=27 // pred_region
          %s262 = smul.u32 3, %s26
          %s264 = ssub.s32 384, 384
          %265 = vsyncadd %s255, %s264
          %s266 = smul.addr %s262, 128
          %s267 = scalar_lea.hbm %s2, %s266
          %s268 = sshll.u32 %s258, 4
          %s269 = int_to_ptr.vmem [resolvable:$true] %s268
          %274 = dma.vmem_to_hbm [thread:$0]  %s269, 384, %s267, %s255, 128, 128, 8
        $region44: #{tpu_custom_call.1} parent=27 // pred_fallthru
          _
      $region28: #{tpu_custom_call.1} parent=5 // pred_fallthru
        _
      %p275 = scmp.le.s32.totalorder 2, %s17
      // Predicated region
      $region45: #{tpu_custom_call.1} parent=5 // pred_check
        %p276 = pneg %p275
      $region46: #{tpu_custom_call.1} parent=5 // pred_check_branch
        %278 = sbr.rel (%p276) target = $region48
      $region47: #{tpu_custom_call.1} parent=5 // pred_region
        %s279 = ssub.s32 %s17, 2
        // Predicated region
        $region49: #{tpu_custom_call.1} parent=47 // pred_check
          %p280 = pneg %p114
        $region50: #{tpu_custom_call.1} parent=47 // pred_check_branch
          %282 = sbr.rel (%p280) target = $region52
        $region51: #{tpu_custom_call.1} parent=47 // pred_region
          %s283 = sand.u32 %s99, 1
          %s284 = scalar_lea.sflag [#allocation4], %s283
          %s285 = sand.u32 %s99, 1
          %s286 = smul.addr %s285, 24
          %s287 = scalar_lea.vmem [#allocation7], %s286
          %288 = dma.done %s284, 384
        $region52: #{tpu_custom_call.1} parent=47 // pred_fallthru
          _
      $region48: #{tpu_custom_call.1} parent=5 // pred_fallthru
        _
    $region6: #{tpu_custom_call.1} parent=1 // loop_footer
      %s21 = sadd.s32 1, %s17
    $region7: #{tpu_custom_call.1} parent=1 // loop_footer_branch
      %16 = sbr.rel target = $region3
    $region8: #{tpu_custom_call.1} parent=1 // loop_exit
      _
    %289 = vsyncpa [#allocation3], 1
    %s290 = scalar_lea.sflag [#allocation3], 1
    %291 = vsyncpa %s290, 1
    %292 = vsyncpa [#allocation6], 1
    %s293 = scalar_lea.sflag [#allocation6], 1
    %294 = vsyncpa %s293, 1
    %295 = vsyncpa [#allocation4], 1
    %s296 = scalar_lea.sflag [#allocation4], 1
    %297 = vsyncpa %s296, 1

</llo_original>
